<compile_context>
chip_gen: v6e
topology: v6e:2x2x1
jax: 0.10.0
libtpu: 0.0.40
codegen_flags: <defaults>
</compile_context>

<pallas_src>
import functools

import jax
import jax.numpy as jnp
from jax.experimental import pallas as pl
from jax.experimental.pallas import tpu as pltpu


def mlp_kernel(x_ref, w1_ref, b1_ref, w2_ref, b2_ref, o_ref):
    # fc1 on the MXU: [TB, D_in] @ [D_in, Hp], fp32 accumulation.
    h = jnp.dot(x_ref[...], w1_ref[...], preferred_element_type=jnp.float32)
    # Bias + ReLU on the VPU.
    h = jnp.maximum(h + b1_ref[...], 0.0)
    # fc2 on the MXU (D_out == 1): contract Hp between w2_row [1, Hp] and
    # h [TB, Hp] -> lane-dense [1, TB] row (unmasked vst on writeback).
    out_row = jax.lax.dot_general(
        w2_ref[...], h,
        dimension_numbers=(((1,), (1,)), ((), ())),
        preferred_element_type=jnp.float32,
    )
    o_ref[...] = (out_row + b2_ref[0, 0]).astype(o_ref.dtype)


def _round_up(n, m):
    return int(pl.cdiv(n, m)) * m


@functools.partial(jax.jit, static_argnames=("tb",))
def feedforward_mlp(x, w1, b1, w2, b2, *, tb=2048):
    """x: [B, D_in], w1: [D_in, H], b1: [1, H], w2: [H, 1], b2: [1, 1]."""
    B, d_in = x.shape
    h_dim, d_out = w2.shape
    assert d_out == 1 and w1.shape == (d_in, h_dim) and b1.shape == (1, h_dim)

    # ---- Host-side layout plumbing -------------------------------------
    # Lane-align the hidden dim: zero-pad to a multiple of 128. Padded w1
    # columns / b1 entries ReLU to 0 and padded w2 rows are 0, so the result
    # is bit-for-bit equivalent for the real columns.
    hp = _round_up(h_dim, 128)
    if hp != h_dim:
        w1 = jnp.pad(w1, ((0, 0), (0, hp - h_dim)))
        b1 = jnp.pad(b1, ((0, 0), (0, hp - h_dim)))
        w2 = jnp.pad(w2, ((0, hp - h_dim), (0, 0)))
    w2_row = w2.reshape(1, hp)           # fc2 weights as a lane-dense row
    b2 = b2.reshape(1, 1)                # scalar -> SMEM

    # Batch tile: multiple of 128 (dense sublanes for x, dense lanes for the
    # transposed output row), capped by the padded batch so small problems run
    # as a single grid step. Per-step live VMEM at tb=2048, hp=128 is ~1.3 MiB
    # (x double-buffer + fp32 [TB,Hp] activation + resident weights), far
    # under even v7x's 64 MiB / 32 MiB default scoped limit.
    tb = min(tb, _round_up(B, 128))
    bp = _round_up(B, tb)
    if bp != B:
        x = jnp.pad(x, ((0, bp - B), (0, 0)))
    grid = (bp // tb,)

    flops = 2 * bp * (d_in * hp + hp)                       # fc1 + fc2
    bytes_accessed = 4 * (bp * d_in + d_in * hp + 2 * hp + 1 + bp)
    cost = pl.CostEstimate(flops=flops, transcendentals=0,
                           bytes_accessed=bytes_accessed)

    out = pl.pallas_call(
        mlp_kernel,
        out_shape=jax.ShapeDtypeStruct((grid[0], tb), jnp.float32),
        grid=grid,
        in_specs=[
            # x: one batch tile per grid step (pipelined prefetch).
            pl.BlockSpec((tb, d_in), lambda i: (i, 0)),
            # Weights / b1: constant block index -> stay resident in VMEM,
            # not re-DMA'd per step.
            pl.BlockSpec((d_in, hp), lambda i: (0, 0)),
            pl.BlockSpec((1, hp), lambda i: (0, 0)),
            pl.BlockSpec((1, hp), lambda i: (0, 0)),
            # b2 scalar lives in SMEM (no padded VMEM tile / DMA stream).
            pl.BlockSpec(memory_space=pltpu.MemorySpace.SMEM),
        ],
        # Lane-dense output: one [1, tb] row per grid step.
        out_specs=pl.BlockSpec((1, tb), lambda i: (i, 0)),
        compiler_params=pltpu.CompilerParams(
            dimension_semantics=("parallel",)),
        cost_estimate=cost,
    )(x, w1, b1, w2_row, b2)

    # (num_tiles, tb) row-major is exactly the padded batch order.
    return out.reshape(bp, 1)[:B]


if __name__ == "__main__":
    # Shapes consistent with the module: input_dim = number of scaled
    # features, hidden_dim = 100, output_dim = 1.
    batch = 256
    input_dim = 16
    hidden_dim = 100
    output_dim = 1

    key = jax.random.PRNGKey(0)
    kx, kw1, kb1, kw2, kb2 = jax.random.split(key, 5)

    x = jax.random.normal(kx, (batch, input_dim), dtype=jnp.float32)

    # Deterministic "PyTorch-like" init (uniform in +/- 1/sqrt(fan_in)).
    bound1 = 1.0 / jnp.sqrt(input_dim)
    w1 = jax.random.uniform(kw1, (input_dim, hidden_dim), jnp.float32,
                            -bound1, bound1)
    b1 = jax.random.uniform(kb1, (1, hidden_dim), jnp.float32,
                            -bound1, bound1)
    bound2 = 1.0 / jnp.sqrt(hidden_dim)
    w2 = jax.random.uniform(kw2, (hidden_dim, output_dim), jnp.float32,
                            -bound2, bound2)
    b2 = jax.random.uniform(kb2, (1, output_dim), jnp.float32,
                            -bound2, bound2)

    out = feedforward_mlp(x, w1, b1, w2, b2)
    out = jax.block_until_ready(out)

    # Pure-JAX reference check (fc1 -> ReLU -> fc2).
    ref = jnp.maximum(x @ w1 + b1, 0.0) @ w2 + b2
    assert out.shape == (batch, output_dim)
    assert jnp.allclose(out, ref, atol=1e-5, rtol=1e-5)

    print("KERNEL_OK")
</pallas_src>

<mosaic_0001>
module attributes {stable_mosaic.version = 11 : i64} {
  func.func @mlp_kernel(%arg0: i32, %arg1: memref<256x16xf32, #tpu.memory_space<vmem>>, %arg2: memref<16x128xf32, #tpu.memory_space<vmem>>, %arg3: memref<1x128xf32, #tpu.memory_space<vmem>>, %arg4: memref<1x128xf32, #tpu.memory_space<vmem>>, %arg5: memref<1x1xf32, #tpu.memory_space<smem>>, %arg6: memref<1x256xf32, #tpu.memory_space<vmem>>) attributes {dimension_semantics = [#tpu.dimension_semantics<parallel>], iteration_bounds = array<i64: 1>, scalar_prefetch = 0 : i64, scratch_operands = 0 : i64, tpu.core_type = #tpu.core_type<tc>, window_params = [{transform_indices = @transform_0, window_bounds = array<i64: 256, 16>}, {pipeline_mode = #tpu.pipeline_mode<synchronous>, transform_indices = @transform_1, window_bounds = array<i64: 16, 128>}, {pipeline_mode = #tpu.pipeline_mode<synchronous>, transform_indices = @transform_2, window_bounds = array<i64: 1, 128>}, {pipeline_mode = #tpu.pipeline_mode<synchronous>, transform_indices = @transform_3, window_bounds = array<i64: 1, 128>}, {transform_indices = @transform_4, window_bounds = array<i64: 1, 1>}, {transform_indices = @transform_5, window_bounds = array<i64: 1, 256>}]} {
    %c0 = arith.constant 0 : index
    %c0_0 = arith.constant 0 : index
    %0 = vector.load %arg1[%c0, %c0_0] : memref<256x16xf32, #tpu.memory_space<vmem>>, vector<256x16xf32>
    %c0_1 = arith.constant 0 : index
    %c0_2 = arith.constant 0 : index
    %1 = vector.load %arg2[%c0_1, %c0_2] : memref<16x128xf32, #tpu.memory_space<vmem>>, vector<16x128xf32>
    %cst = arith.constant dense<0.000000e+00> : vector<256x128xf32>
    %2 = tpu.matmul %0, %1, %cst {dimension_numbers = #tpu.dot_dimension_numbers<[1], [0], [0], [1], [0, 0, 1, 1], [], []>} : vector<256x16xf32>, vector<16x128xf32>, vector<256x128xf32> -> vector<256x128xf32>
    %c0_3 = arith.constant 0 : index
    %c0_4 = arith.constant 0 : index
    %3 = vector.load %arg3[%c0_3, %c0_4] : memref<1x128xf32, #tpu.memory_space<vmem>>, vector<1x128xf32>
    %4 = vector.broadcast %3 : vector<1x128xf32> to vector<256x128xf32>
    %5 = arith.addf %2, %4 : vector<256x128xf32>
    %cst_5 = arith.constant 0.000000e+00 : f32
    %6 = vector.broadcast %cst_5 : f32 to vector<256x128xf32>
    %7 = arith.maximumf %5, %6 : vector<256x128xf32>
    %c0_6 = arith.constant 0 : index
    %c0_7 = arith.constant 0 : index
    %8 = vector.load %arg4[%c0_6, %c0_7] : memref<1x128xf32, #tpu.memory_space<vmem>>, vector<1x128xf32>
    %cst_8 = arith.constant dense<0.000000e+00> : vector<1x256xf32>
    %9 = tpu.matmul %8, %7, %cst_8 {dimension_numbers = #tpu.dot_dimension_numbers<[1], [1], [0], [0], [0, 0, 1, 0], [], []>} : vector<1x128xf32>, vector<256x128xf32>, vector<1x256xf32> -> vector<1x256xf32>
    %c0_9 = arith.constant 0 : index
    %c0_10 = arith.constant 0 : index
    %10 = memref.load %arg5[%c0_9, %c0_10] : memref<1x1xf32, #tpu.memory_space<smem>>
    %11 = vector.broadcast %10 : f32 to vector<1x256xf32>
    %12 = arith.addf %9, %11 : vector<1x256xf32>
    %c0_11 = arith.constant 0 : index
    %c0_12 = arith.constant 0 : index
    %13 = vector.load %arg6[%c0_11, %c0_12] : memref<1x256xf32, #tpu.memory_space<vmem>>, vector<1x256xf32>
    tpu.vector_store %arg6[%c0_11, %c0_12], %12 {strides = array<i32>} : memref<1x256xf32, #tpu.memory_space<vmem>>, vector<1x256xf32>,
    return
  }
  func.func @transform_0(%arg0: i32) -> (i32, i32) {
    %c0_i32 = arith.constant 0 : i32
    %c0_i32_0 = arith.constant 0 : i32
    return %arg0, %c0_i32 : i32, i32
  }
  func.func @transform_1(%arg0: i32) -> (i32, i32) {
    %c0_i32 = arith.constant 0 : i32
    %c0_i32_0 = arith.constant 0 : i32
    %c0_i32_1 = arith.constant 0 : i32
    return %c0_i32, %c0_i32_0 : i32, i32
  }
  func.func @transform_2(%arg0: i32) -> (i32, i32) {
    %c0_i32 = arith.constant 0 : i32
    %c0_i32_0 = arith.constant 0 : i32
    %c0_i32_1 = arith.constant 0 : i32
    return %c0_i32, %c0_i32_0 : i32, i32
  }
  func.func @transform_3(%arg0: i32) -> (i32, i32) {
    %c0_i32 = arith.constant 0 : i32
    %c0_i32_0 = arith.constant 0 : i32
    %c0_i32_1 = arith.constant 0 : i32
    return %c0_i32, %c0_i32_0 : i32, i32
  }
  func.func @transform_4(%arg0: i32) -> (i32, i32) {
    %c0_i32 = arith.constant 0 : i32
    %c0_i32_0 = arith.constant 0 : i32
    %c0_i32_1 = arith.constant 0 : i32
    return %c0_i32, %c0_i32_0 : i32, i32
  }
  func.func @transform_5(%arg0: i32) -> (i32, i32) {
    %c0_i32 = arith.constant 0 : i32
    %c0_i32_0 = arith.constant 0 : i32
    return %arg0, %c0_i32 : i32, i32
  }
}

</mosaic_0001>

<llo_original>
// kernel: feedforward_mlp.1
$region0: #{feedforward_mlp.1}
  #allocation0 [shape = 'u32[]', space=smem, size = 0x4, offset = 0x4, fixed_abs, tag = 'smem constant byte address 0x4 - core index']
  #allocation1 [shape = 'u32[144,128]{1,0:T(1,128)}', space=vmem, size = 0x12000, scoped, tag = 'internal scratch']
  #allocation2 [shape = 'f32[1,1]{1,0:T(1,128)S(6)}', space=smem, size = 0x200, scoped, tag = 'scoped memory for feedforward_mlp.1']
  %s0 = inlined_call_operand.vmem [shape: f32[256,16], index: 0, kind: input, shape index: {}]
  %s1 = inlined_call_operand.vmem [shape: f32[16,128], index: 1, kind: input, shape index: {}]
  %s2 = inlined_call_operand.vmem [shape: f32[1,128], index: 2, kind: input, shape index: {}]
  %s3 = inlined_call_operand.vmem [shape: f32[1,128], index: 3, kind: input, shape index: {}]
  %s4 = inlined_call_operand.<no memory space> [shape: f32[1,1], index: 4, kind: input, shape index: {}]
  %s5 = inlined_call_operand.hbm [shape: f32[1,256], index: 5, kind: output, shape index: {}]
  %s6 = sld [smem:[#allocation0]]
  $region30: #{feedforward_mlp.1} parent=0
    _
  %s8 = ssub.s32 1, %s6
  %s9 = scalar_select 0, %s8, %s6
  %10 = sst [smem:[#allocation2]] %s4
  $region1: #{feedforward_mlp.1} parent=0
    #allocation3 [shape = 'u8[1024]{0}', space=vmem, size = 0x400, scoped, tag = 'output window, operand 0, single buffered']
    #allocation4 [shape = 's32[1]{0}', space=sflag, size = 0x4, scoped, tag = 'scoped memory for feedforward_mlp.1']
    %11 = vsyncpa [#allocation4], 0
    // Predicated region
    $region2: #{feedforward_mlp.1} parent=1 // pred_check
      _
    $region3: #{feedforward_mlp.1} parent=1 // pred_check_branch
      %13 = sbr.rel (0) target = $region5
    $region4: #{feedforward_mlp.1} parent=1 // pred_region
      _
    $region5: #{feedforward_mlp.1} parent=1 // pred_fallthru
      _
    // Predicated region
    $region6: #{feedforward_mlp.1} parent=1 // pred_check
      _
    $region7: #{feedforward_mlp.1} parent=1 // pred_check_branch
      %15 = sbr.rel (0) target = $region9
    $region8: #{feedforward_mlp.1} parent=1 // pred_region
      _
    $region9: #{feedforward_mlp.1} parent=1 // pred_fallthru
      _
    // Predicated region
    $region10: #{feedforward_mlp.1} parent=1 // pred_check
      _
    $region11: #{feedforward_mlp.1} parent=1 // pred_check_branch
      %17 = sbr.rel (0) target = $region13
    $region12: #{feedforward_mlp.1} parent=1 // pred_region
      _
    $region13: #{feedforward_mlp.1} parent=1 // pred_fallthru
      _
    // Predicated region
    $region14: #{feedforward_mlp.1} parent=1 // pred_check
      _
    $region15: #{feedforward_mlp.1} parent=1 // pred_check_branch
      %19 = sbr.rel (0) target = $region17
    $region16: #{feedforward_mlp.1} parent=1 // pred_region
      _
    $region17: #{feedforward_mlp.1} parent=1 // pred_fallthru
      _
    // Predicated region
    $region18: #{feedforward_mlp.1} parent=1 // pred_check
      _
    $region19: #{feedforward_mlp.1} parent=1 // pred_check_branch
      %21 = sbr.rel (0) target = $region21
    $region20: #{feedforward_mlp.1} parent=1 // pred_region
      _
    $region21: #{feedforward_mlp.1} parent=1 // pred_fallthru
      _
    %v22 = vld [vmem:[%s0] sm:$0xff]
    %v23 = vld [vmem:[%s0 + $0x8] sm:$0xff]
    %v24 = vld [vmem:[%s0 + $0x10] sm:$0xff]
    %v25 = vld [vmem:[%s0 + $0x18] sm:$0xff]
    %v26 = vld [vmem:[%s0 + $0x20] sm:$0xff]
    %v27 = vld [vmem:[%s0 + $0x28] sm:$0xff]
    %v28 = vld [vmem:[%s0 + $0x30] sm:$0xff]
    %v29 = vld [vmem:[%s0 + $0x38] sm:$0xff]
    %v30 = vld [vmem:[%s0 + $0x40] sm:$0xff]
    %v31 = vld [vmem:[%s0 + $0x48] sm:$0xff]
    %v32 = vld [vmem:[%s0 + $0x50] sm:$0xff]
    %v33 = vld [vmem:[%s0 + $0x58] sm:$0xff]
    %v34 = vld [vmem:[%s0 + $0x60] sm:$0xff]
    %v35 = vld [vmem:[%s0 + $0x68] sm:$0xff]
    %v36 = vld [vmem:[%s0 + $0x70] sm:$0xff]
    %v37 = vld [vmem:[%s0 + $0x78] sm:$0xff]
    %v38 = vld [vmem:[%s0 + $0x80] sm:$0xff]
    %v39 = vld [vmem:[%s0 + $0x88] sm:$0xff]
    %v40 = vld [vmem:[%s0 + $0x90] sm:$0xff]
    %v41 = vld [vmem:[%s0 + $0x98] sm:$0xff]
    %v42 = vld [vmem:[%s0 + $0xa0] sm:$0xff]
    %v43 = vld [vmem:[%s0 + $0xa8] sm:$0xff]
    %v44 = vld [vmem:[%s0 + $0xb0] sm:$0xff]
    %v45 = vld [vmem:[%s0 + $0xb8] sm:$0xff]
    %v46 = vld [vmem:[%s0 + $0xc0] sm:$0xff]
    %v47 = vld [vmem:[%s0 + $0xc8] sm:$0xff]
    %v48 = vld [vmem:[%s0 + $0xd0] sm:$0xff]
    %v49 = vld [vmem:[%s0 + $0xd8] sm:$0xff]
    %v50 = vld [vmem:[%s0 + $0xe0] sm:$0xff]
    %v51 = vld [vmem:[%s0 + $0xe8] sm:$0xff]
    %v52 = vld [vmem:[%s0 + $0xf0] sm:$0xff]
    %v53 = vld [vmem:[%s0 + $0xf8] sm:$0xff]
    %v54 = vld [vmem:[%s1] sm:$0xff]
    %v55 = vld [vmem:[%s1 + $0x8] sm:$0xff]
    %v56 = vld [vmem:[%s2] sm:$0x1]
    %v58 = vlaneseq
    %v59 = vshrl.u32 %v58, 7
    %v60 = vsub.s32 0, %v59
    %v61 = vrot.slane %v56, %v60
    %vm63 = vcmask 130048
    %v65 = vsel %vm63, %v22, 0
    %v68 = vsel %vm63, %v23, 0
    %v71 = vsel %vm63, %v24, 0
    %v74 = vsel %vm63, %v25, 0
    %v77 = vsel %vm63, %v26, 0
    %v80 = vsel %vm63, %v27, 0
    %v83 = vsel %vm63, %v28, 0
    %v86 = vsel %vm63, %v29, 0
    %v89 = vsel %vm63, %v30, 0
    %v92 = vsel %vm63, %v31, 0
    %v95 = vsel %vm63, %v32, 0
    %v98 = vsel %vm63, %v33, 0
    %v101 = vsel %vm63, %v34, 0
    %v104 = vsel %vm63, %v35, 0
    %v107 = vsel %vm63, %v36, 0
    %v110 = vsel %vm63, %v37, 0
    %v113 = vsel %vm63, %v38, 0
    %v116 = vsel %vm63, %v39, 0
    %v119 = vsel %vm63, %v40, 0
    %v122 = vsel %vm63, %v41, 0
    %v125 = vsel %vm63, %v42, 0
    %v128 = vsel %vm63, %v43, 0
    %v131 = vsel %vm63, %v44, 0
    %v134 = vsel %vm63, %v45, 0
    %v137 = vsel %vm63, %v46, 0
    %v140 = vsel %vm63, %v47, 0
    %v143 = vsel %vm63, %v48, 0
    %v146 = vsel %vm63, %v49, 0
    %v149 = vsel %vm63, %v50, 0
    %v152 = vsel %vm63, %v51, 0
    %v155 = vsel %vm63, %v52, 0
    %v158 = vsel %vm63, %v53, 0
    %160 = vmatprep.subr.mxu0 0.0
    %161 = vmatpush1.msra.mxu0 0.0
    %162 = vmatprep.subr.mxu0 0.0
    %163 = vmatpush1.msra.mxu0 0.0
    %164 = vmatprep.subr.mxu0 0.0
    %165 = vmatpush1.msra.mxu0 0.0
    %166 = vmatprep.subr.mxu0 0.0
    %167 = vmatpush1.msra.mxu0 0.0
    %168 = vmatprep.subr.mxu0 0.0
    %169 = vmatpush1.msra.mxu0 0.0
    %170 = vmatprep.subr.mxu0 0.0
    %171 = vmatpush1.msra.mxu0 0.0
    %172 = vmatprep.subr.mxu0 0.0
    %173 = vmatpush1.msra.mxu0 0.0
    %174 = vmatprep.subr.mxu0 0.0
    %175 = vmatpush1.msra.mxu0 0.0
    %176 = vmatprep.subr.mxu0 0.0
    %177 = vmatpush1.msra.mxu0 0.0
    %178 = vmatprep.subr.mxu0 0.0
    %179 = vmatpush1.msra.mxu0 0.0
    %180 = vmatprep.subr.mxu0 0.0
    %181 = vmatpush1.msra.mxu0 0.0
    %182 = vmatprep.subr.mxu0 0.0
    %183 = vmatpush1.msra.mxu0 0.0
    %184 = vmatprep.subr.mxu0 0.0
    %185 = vmatpush1.msra.mxu0 0.0
    %186 = vmatprep.subr.mxu0 0.0
    %187 = vmatpush1.msra.mxu0 0.0
    %188 = vmatprep.subr.mxu0 0.0
    %189 = vmatpush1.msra.mxu0 %v55
    %190 = vmatprep.subr.mxu0 0.0
    %191 = vmatpush1.msra.mxu0 %v54
    %192 = vmatprep.subr.mxu0 0.0
    %193 = vmatpush2.msra.mxu0 0.0
    %194 = vmatprep.subr.mxu0 0.0
    %195 = vmatpush2.msra.mxu0 0.0
    %196 = vmatprep.subr.mxu0 0.0
    %197 = vmatpush2.msra.mxu0 0.0
    %198 = vmatprep.subr.mxu0 0.0
    %199 = vmatpush2.msra.mxu0 0.0
    %200 = vmatprep.subr.mxu0 0.0
    %201 = vmatpush2.msra.mxu0 0.0
    %202 = vmatprep.subr.mxu0 0.0
    %203 = vmatpush2.msra.mxu0 0.0
    %204 = vmatprep.subr.mxu0 0.0
    %205 = vmatpush2.msra.mxu0 0.0
    %206 = vmatprep.subr.mxu0 0.0
    %207 = vmatpush2.msra.mxu0 0.0
    %208 = vmatprep.subr.mxu0 0.0
    %209 = vmatpush2.msra.mxu0 0.0
    %210 = vmatprep.subr.mxu0 0.0
    %211 = vmatpush2.msra.mxu0 0.0
    %212 = vmatprep.subr.mxu0 0.0
    %213 = vmatpush2.msra.mxu0 0.0
    %214 = vmatprep.subr.mxu0 0.0
    %215 = vmatpush2.msra.mxu0 0.0
    %216 = vmatprep.subr.mxu0 0.0
    %217 = vmatpush2.msra.mxu0 0.0
    %218 = vmatprep.subr.mxu0 0.0
    %219 = vmatpush2.msra.mxu0 0.0
    %220 = vmatprep.subr.mxu0 0.0
    %221 = vmatpush2.msra.mxu0 0.0
    %222 = vmatprep.subr.mxu0 0.0
    %223 = vmatpush2.msra.mxu0 0.0
    %224 = vmatprep.mubr.f32.mxu0 0.0
    %225 = vmatmul.mubr.f32.gmra.mxu0 %v65
    %v226 = vpop.f32.mrf.mxu0
    %v227 = vadd.f32 %v61, %v226
    %v228 = vpop.f32.mrf.mxu0
    %229 = vmatprep.mubr.f32.mxu0 0.0
    %230 = vmatmul.mubr.f32.gmra.mxu0 %v68
    %v231 = vpop.f32.mrf.mxu0
    %v232 = vadd.f32 %v61, %v231
    %v233 = vpop.f32.mrf.mxu0
    %234 = vmatprep.mubr.f32.mxu0 0.0
    %235 = vmatmul.mubr.f32.gmra.mxu0 %v71
    %v236 = vpop.f32.mrf.mxu0
    %v237 = vadd.f32 %v61, %v236
    %v238 = vpop.f32.mrf.mxu0
    %239 = vmatprep.mubr.f32.mxu0 0.0
    %240 = vmatmul.mubr.f32.gmra.mxu0 %v74
    %v241 = vpop.f32.mrf.mxu0
    %v242 = vadd.f32 %v61, %v241
    %v243 = vpop.f32.mrf.mxu0
    %244 = vmatprep.mubr.f32.mxu0 0.0
    %245 = vmatmul.mubr.f32.gmra.mxu0 %v77
    %v246 = vpop.f32.mrf.mxu0
    %v247 = vadd.f32 %v61, %v246
    %v248 = vpop.f32.mrf.mxu0
    %249 = vmatprep.mubr.f32.mxu0 0.0
    %250 = vmatmul.mubr.f32.gmra.mxu0 %v80
    %v251 = vpop.f32.mrf.mxu0
    %v252 = vadd.f32 %v61, %v251
    %v253 = vpop.f32.mrf.mxu0
    %254 = vmatprep.mubr.f32.mxu0 0.0
    %255 = vmatmul.mubr.f32.gmra.mxu0 %v83
    %v256 = vpop.f32.mrf.mxu0
    %v257 = vadd.f32 %v61, %v256
    %v258 = vpop.f32.mrf.mxu0
    %259 = vmatprep.mubr.f32.mxu0 0.0
    %260 = vmatmul.mubr.f32.gmra.mxu0 %v86
    %v261 = vpop.f32.mrf.mxu0
    %v262 = vadd.f32 %v61, %v261
    %v263 = vpop.f32.mrf.mxu0
    %264 = vmatprep.mubr.f32.mxu0 0.0
    %265 = vmatmul.mubr.f32.gmra.mxu0 %v89
    %v266 = vpop.f32.mrf.mxu0
    %v267 = vadd.f32 %v61, %v266
    %v268 = vpop.f32.mrf.mxu0
    %269 = vmatprep.mubr.f32.mxu0 0.0
    %270 = vmatmul.mubr.f32.gmra.mxu0 %v92
    %v271 = vpop.f32.mrf.mxu0
    %v272 = vadd.f32 %v61, %v271
    %v273 = vpop.f32.mrf.mxu0
    %274 = vmatprep.mubr.f32.mxu0 0.0
    %275 = vmatmul.mubr.f32.gmra.mxu0 %v95
    %v276 = vpop.f32.mrf.mxu0
    %v277 = vadd.f32 %v61, %v276
    %v278 = vpop.f32.mrf.mxu0
    %279 = vmatprep.mubr.f32.mxu0 0.0
    %280 = vmatmul.mubr.f32.gmra.mxu0 %v98
    %v281 = vpop.f32.mrf.mxu0
    %v282 = vadd.f32 %v61, %v281
    %v283 = vpop.f32.mrf.mxu0
    %284 = vmatprep.mubr.f32.mxu0 0.0
    %285 = vmatmul.mubr.f32.gmra.mxu0 %v101
    %v286 = vpop.f32.mrf.mxu0
    %v287 = vadd.f32 %v61, %v286
    %v288 = vpop.f32.mrf.mxu0
    %289 = vmatprep.mubr.f32.mxu0 0.0
    %290 = vmatmul.mubr.f32.gmra.mxu0 %v104
    %v291 = vpop.f32.mrf.mxu0
    %v292 = vadd.f32 %v61, %v291
    %v293 = vpop.f32.mrf.mxu0
    %294 = vmatprep.mubr.f32.mxu0 0.0
    %295 = vmatmul.mubr.f32.gmra.mxu0 %v107
    %v296 = vpop.f32.mrf.mxu0
    %v297 = vadd.f32 %v61, %v296
    %v298 = vpop.f32.mrf.mxu0
    %299 = vmatprep.mubr.f32.mxu0 0.0
    %300 = vmatmul.mubr.f32.gmra.mxu0 %v110
    %v301 = vpop.f32.mrf.mxu0
    %v302 = vadd.f32 %v61, %v301
    %v303 = vpop.f32.mrf.mxu0
    %304 = vmatprep.mubr.f32.mxu0 0.0
    %305 = vmatmul.mubr.f32.gmra.mxu0 %v113
    %v306 = vpop.f32.mrf.mxu0
    %v307 = vadd.f32 %v61, %v306
    %v308 = vpop.f32.mrf.mxu0
    %309 = vmatprep.mubr.f32.mxu0 0.0
    %310 = vmatmul.mubr.f32.gmra.mxu0 %v116
    %v311 = vpop.f32.mrf.mxu0
    %v312 = vadd.f32 %v61, %v311
    %v313 = vpop.f32.mrf.mxu0
    %314 = vmatprep.mubr.f32.mxu0 0.0
    %315 = vmatmul.mubr.f32.gmra.mxu0 %v119
    %v316 = vpop.f32.mrf.mxu0
    %v317 = vadd.f32 %v61, %v316
    %v318 = vpop.f32.mrf.mxu0
    %319 = vmatprep.mubr.f32.mxu0 0.0
    %320 = vmatmul.mubr.f32.gmra.mxu0 %v122
    %v321 = vpop.f32.mrf.mxu0
    %v322 = vadd.f32 %v61, %v321
    %v323 = vpop.f32.mrf.mxu0
    %324 = vmatprep.mubr.f32.mxu0 0.0
    %325 = vmatmul.mubr.f32.gmra.mxu0 %v125
    %v326 = vpop.f32.mrf.mxu0
    %v327 = vadd.f32 %v61, %v326
    %v328 = vpop.f32.mrf.mxu0
    %329 = vmatprep.mubr.f32.mxu0 0.0
    %330 = vmatmul.mubr.f32.gmra.mxu0 %v128
    %v331 = vpop.f32.mrf.mxu0
    %v332 = vadd.f32 %v61, %v331
    %v333 = vpop.f32.mrf.mxu0
    %334 = vmatprep.mubr.f32.mxu0 0.0
    %335 = vmatmul.mubr.f32.gmra.mxu0 %v131
    %v336 = vpop.f32.mrf.mxu0
    %v337 = vadd.f32 %v61, %v336
    %v338 = vpop.f32.mrf.mxu0
    %339 = vmatprep.mubr.f32.mxu0 0.0
    %340 = vmatmul.mubr.f32.gmra.mxu0 %v134
    %v341 = vpop.f32.mrf.mxu0
    %v342 = vadd.f32 %v61, %v341
    %v343 = vpop.f32.mrf.mxu0
    %344 = vmatprep.mubr.f32.mxu0 0.0
    %345 = vmatmul.mubr.f32.gmra.mxu0 %v137
    %v346 = vpop.f32.mrf.mxu0
    %v347 = vadd.f32 %v61, %v346
    %v348 = vpop.f32.mrf.mxu0
    %349 = vmatprep.mubr.f32.mxu0 0.0
    %350 = vmatmul.mubr.f32.gmra.mxu0 %v140
    %v351 = vpop.f32.mrf.mxu0
    %v352 = vadd.f32 %v61, %v351
    %v353 = vpop.f32.mrf.mxu0
    %354 = vmatprep.mubr.f32.mxu0 0.0
    %355 = vmatmul.mubr.f32.gmra.mxu0 %v143
    %v356 = vpop.f32.mrf.mxu0
    %v357 = vadd.f32 %v61, %v356
    %v358 = vpop.f32.mrf.mxu0
    %359 = vmatprep.mubr.f32.mxu0 0.0
    %360 = vmatmul.mubr.f32.gmra.mxu0 %v146
    %v361 = vpop.f32.mrf.mxu0
    %v362 = vadd.f32 %v61, %v361
    %v363 = vpop.f32.mrf.mxu0
    %364 = vmatprep.mubr.f32.mxu0 0.0
    %365 = vmatmul.mubr.f32.gmra.mxu0 %v149
    %v366 = vpop.f32.mrf.mxu0
    %v367 = vadd.f32 %v61, %v366
    %v368 = vpop.f32.mrf.mxu0
    %369 = vmatprep.mubr.f32.mxu0 0.0
    %370 = vmatmul.mubr.f32.gmra.mxu0 %v152
    %v371 = vpop.f32.mrf.mxu0
    %v372 = vadd.f32 %v61, %v371
    %v373 = vpop.f32.mrf.mxu0
    %374 = vmatprep.mubr.f32.mxu0 0.0
    %375 = vmatmul.mubr.f32.gmra.mxu0 %v155
    %v376 = vpop.f32.mrf.mxu0
    %v377 = vadd.f32 %v61, %v376
    %v378 = vpop.f32.mrf.mxu0
    %379 = vmatprep.mubr.f32.mxu0 0.0
    %380 = vmatmul.mubr.f32.gmra.mxu0 %v158
    %v381 = vpop.f32.mrf.mxu0
    %v382 = vadd.f32 %v61, %v381
    %v383 = vpop.f32.mrf.mxu0
    %384 = vdwg.mxu0
    %v385 = vmax.f32 %v227, 0.0
    %v386 = vmax.f32 %v232, 0.0
    %v387 = vmax.f32 %v237, 0.0
    %v388 = vmax.f32 %v242, 0.0
    %v389 = vmax.f32 %v247, 0.0
    %v390 = vmax.f32 %v252, 0.0
    %v391 = vmax.f32 %v257, 0.0
    %v392 = vmax.f32 %v262, 0.0
    %v393 = vmax.f32 %v267, 0.0
    %v394 = vmax.f32 %v272, 0.0
    %v395 = vmax.f32 %v277, 0.0
    %v396 = vmax.f32 %v282, 0.0
    %v397 = vmax.f32 %v287, 0.0
    %v398 = vmax.f32 %v292, 0.0
    %v399 = vmax.f32 %v297, 0.0
    %v400 = vmax.f32 %v302, 0.0
    %v401 = vmax.f32 %v307, 0.0
    %v402 = vmax.f32 %v312, 0.0
    %v403 = vmax.f32 %v317, 0.0
    %v404 = vmax.f32 %v322, 0.0
    %v405 = vmax.f32 %v327, 0.0
    %v406 = vmax.f32 %v332, 0.0
    %v407 = vmax.f32 %v337, 0.0
    %v408 = vmax.f32 %v342, 0.0
    %v409 = vmax.f32 %v347, 0.0
    %v410 = vmax.f32 %v352, 0.0
    %v411 = vmax.f32 %v357, 0.0
    %v412 = vmax.f32 %v362, 0.0
    %v413 = vmax.f32 %v367, 0.0
    %v414 = vmax.f32 %v372, 0.0
    %v415 = vmax.f32 %v377, 0.0
    %v416 = vmax.f32 %v382, 0.0
    %v417 = vld [vmem:[%s3] sm:$0x1]
    %s418 = sld [smem:[#allocation2]]
    %v419 = vstv %s418
    %420 = vmatprep.subr.mxu0 0.0
    %421 = vmatpush1.xpose.msra.mxu0 %v400
    %422 = vmatprep.subr.mxu0 0.0
    %423 = vmatpush1.xpose.msra.mxu0 %v399
    %424 = vmatprep.subr.mxu0 0.0
    %425 = vmatpush1.xpose.msra.mxu0 %v398
    %426 = vmatprep.subr.mxu0 0.0
    %427 = vmatpush1.xpose.msra.mxu0 %v397
    %428 = vmatprep.subr.mxu0 0.0
    %429 = vmatpush1.xpose.msra.mxu0 %v396
    %430 = vmatprep.subr.mxu0 0.0
    %431 = vmatpush1.xpose.msra.mxu0 %v395
    %432 = vmatprep.subr.mxu0 0.0
    %433 = vmatpush1.xpose.msra.mxu0 %v394
    %434 = vmatprep.subr.mxu0 0.0
    %435 = vmatpush1.xpose.msra.mxu0 %v393
    %436 = vmatprep.subr.mxu0 0.0
    %437 = vmatpush1.xpose.msra.mxu0 %v392
    %438 = vmatprep.subr.mxu0 0.0
    %439 = vmatpush1.xpose.msra.mxu0 %v391
    %440 = vmatprep.subr.mxu0 0.0
    %441 = vmatpush1.xpose.msra.mxu0 %v390
    %442 = vmatprep.subr.mxu0 0.0
    %443 = vmatpush1.xpose.msra.mxu0 %v389
    %444 = vmatprep.subr.mxu0 0.0
    %445 = vmatpush1.xpose.msra.mxu0 %v388
    %446 = vmatprep.subr.mxu0 0.0
    %447 = vmatpush1.xpose.msra.mxu0 %v387
    %448 = vmatprep.subr.mxu0 0.0
    %449 = vmatpush1.xpose.msra.mxu0 %v386
    %450 = vmatprep.subr.mxu0 0.0
    %451 = vmatpush1.xpose.msra.mxu0 %v385
    %452 = vmatprep.subr.mxu0 0.0
    %453 = vmatpush2.xpose.msra.mxu0 %v416
    %454 = vmatprep.subr.mxu0 0.0
    %455 = vmatpush2.xpose.msra.mxu0 %v415
    %456 = vmatprep.subr.mxu0 0.0
    %457 = vmatpush2.xpose.msra.mxu0 %v414
    %458 = vmatprep.subr.mxu0 0.0
    %459 = vmatpush2.xpose.msra.mxu0 %v413
    %460 = vmatprep.subr.mxu0 0.0
    %461 = vmatpush2.xpose.msra.mxu0 %v412
    %462 = vmatprep.subr.mxu0 0.0
    %463 = vmatpush2.xpose.msra.mxu0 %v411
    %464 = vmatprep.subr.mxu0 0.0
    %465 = vmatpush2.xpose.msra.mxu0 %v410
    %466 = vmatprep.subr.mxu0 0.0
    %467 = vmatpush2.xpose.msra.mxu0 %v409
    %468 = vmatprep.subr.mxu0 0.0
    %469 = vmatpush2.xpose.msra.mxu0 %v408
    %470 = vmatprep.subr.mxu0 0.0
    %471 = vmatpush2.xpose.msra.mxu0 %v407
    %472 = vmatprep.subr.mxu0 0.0
    %473 = vmatpush2.xpose.msra.mxu0 %v406
    %474 = vmatprep.subr.mxu0 0.0
    %475 = vmatpush2.xpose.msra.mxu0 %v405
    %476 = vmatprep.subr.mxu0 0.0
    %477 = vmatpush2.xpose.msra.mxu0 %v404
    %478 = vmatprep.subr.mxu0 0.0
    %479 = vmatpush2.xpose.msra.mxu0 %v403
    %480 = vmatprep.subr.mxu0 0.0
    %481 = vmatpush2.xpose.msra.mxu0 %v402
    %482 = vmatprep.subr.mxu0 0.0
    %483 = vmatpush2.xpose.msra.mxu0 %v401
    %484 = vmatprep.mubr.f32.mxu0 0.0
    %485 = vmatmul.mubr.f32.gmra.mxu0 %v417
    %v486 = vpop.f32.mrf.mxu0
    %v487 = vadd.f32 %v419, %v486
    %v488 = vpop.f32.mrf.mxu0
    %v489 = vadd.f32 %v419, %v488
    %490 = vdwg.mxu0
    %v493 = vcombine.low %v487, %v489
    %v495 = vunpack.c.l.s4 1966171168
    %v496 = vunpack.c.0.s8 %v495
    %v497 = vlaneseq
    %v498 = vshrl.u32 %v497, 7
    %v499 = vsub.s32 %v496, %v498
    %v500 = vrot.slane %v493, %v499
    %v502 = vunpack.c.l.s4 1966171168
    %v503 = vunpack.c.0.s8 %v502
    %v504 = vlaneseq
    %v505 = vshrl.u32 %v504, 7
    %v506 = vsub.s32 %v503, %v505
    %v507 = vrot.slane %v500, %v506
    %v509 = vlaneseq
    %vm510 = vcmp.ge.s32.totalorder %v509, 0
    %vm511 = vcmp.lt.s32.totalorder %v509, 256
    %vm512 = vmand %vm510, %vm511
    %513 = vst.msk [vmem:[#allocation3] sm:$0x3] %vm512, %v507
    // Predicated region
    $region22: #{feedforward_mlp.1} parent=1 // pred_check
      _
    $region23: #{feedforward_mlp.1} parent=1 // pred_check_branch
      %515 = sbr.rel (0) target = $region25
    $region24: #{feedforward_mlp.1} parent=1 // pred_region
      %s517 = ssub.s32 32, 32
      %518 = vsyncadd [#allocation4], %s517
      %s520 = sshll.u32 [#allocation3], 4
      %s521 = int_to_ptr.vmem [resolvable:$true] %s520
      %523 = dma.vmem_to_hbm [thread:$0]  %s521, 32, %s5, [#allocation4]
    $region25: #{feedforward_mlp.1} parent=1 // pred_fallthru
      _
    // Predicated region
    $region26: #{feedforward_mlp.1} parent=1 // pred_check
      _
    $region27: #{feedforward_mlp.1} parent=1 // pred_check_branch
      %525 = sbr.rel (0) target = $region29
    $region28: #{feedforward_mlp.1} parent=1 // pred_region
      %526 = dma.done [#allocation4], 32
    $region29: #{feedforward_mlp.1} parent=1 // pred_fallthru
      _
    %527 = vsyncpa [#allocation4], 1

</llo_original>
